<compile_context>
chip_gen: v7x
topology: tpu7x:2x2x1
jax: 0.10.0
libtpu: 0.0.40
codegen_flags: <defaults>
</compile_context>

<pallas_src>
import functools

import jax
import jax.numpy as jnp
from jax.experimental import pallas as pl
from jax.experimental.pallas import tpu as pltpu

_MIB = 1024 * 1024


# ----------------------------------------------------------------------------
# Kernels
# ----------------------------------------------------------------------------

def _world2cam_kernel_3d(aff_ref, xyz_ref, o_ref):
    """Channel-major path: o[b, c, n] = sum_k R[b,c,k] * x[b,k,n] - t[c].

    aff_ref : VMEM (Bt, 3, 4)  per-batch [R | -t]  (tiny; block index constant
              along the point-tile axis so it is not re-fetched per N tile)
    xyz_ref : VMEM (Bt, 3, Nt) channel-major points, lane-dense along N
    o_ref   : VMEM (Bt, 3, Nt) channel-major output (one unmasked block store)
    """
    x0 = xyz_ref[:, 0:1, :]          # (Bt, 1, Nt) sublane-broadcast rows
    x1 = xyz_ref[:, 1:2, :]
    x2 = xyz_ref[:, 2:3, :]
    c0 = aff_ref[:, :, 0:1]          # (Bt, 3, 1) lane-broadcast columns
    c1 = aff_ref[:, :, 1:2]
    c2 = aff_ref[:, :, 2:3]
    c3 = aff_ref[:, :, 3:4]          # = -t  (only row 2 is nonzero)
    o_ref[...] = x0 * c0 + x1 * c1 + x2 * c2 + c3


def _world2cam_kernel_2d(aff_ref, xyz_ref, o_ref, *, n):
    """Fully dense path on a (B, 3N) view: no 3->8 sublane padding.

    aff_ref : VMEM (Bt, 12)   per-batch [R row-major (9) | -t (3)]
    xyz_ref : VMEM (Bt, 3N)   [x0 lanes | x1 lanes | x2 lanes], N % 128 == 0
    o_ref   : VMEM (Bt, 3N)   three lane-aligned unmasked stores
    """
    a = aff_ref[...]                         # (Bt, 12)
    x0 = xyz_ref[:, 0 * n:1 * n]             # (Bt, N) lane-aligned slices
    x1 = xyz_ref[:, 1 * n:2 * n]
    x2 = xyz_ref[:, 2 * n:3 * n]
    for c in range(3):                       # static unroll over output rows
        o_ref[:, c * n:(c + 1) * n] = (
            x0 * a[:, 3 * c + 0:3 * c + 1]
            + x1 * a[:, 3 * c + 1:3 * c + 2]
            + x2 * a[:, 3 * c + 2:3 * c + 3]
            + a[:, 9 + c:10 + c])


# ----------------------------------------------------------------------------
# Parameter setup (tiny, plain JAX — identical math to the PyTorch module)
# ----------------------------------------------------------------------------

def _build_rotmat(az, el):
    """Rotation construction matching the PyTorch module, (B, 3, 3) f32."""
    zeros = jnp.zeros_like(az)
    ones = jnp.ones_like(az)
    rotmat_az = jnp.stack(
        [
            jnp.stack([ones, zeros, zeros]),
            jnp.stack([zeros, jnp.cos(az), -jnp.sin(az)]),
            jnp.stack([zeros, jnp.sin(az), jnp.cos(az)]),
        ],
        axis=0,
    )  # (3, 3, B)
    rotmat_el = jnp.stack(
        [
            jnp.stack([jnp.cos(el), zeros, jnp.sin(el)]),
            jnp.stack([zeros, ones, zeros]),
            jnp.stack([-jnp.sin(el), zeros, jnp.cos(el)]),
        ],
        axis=0,
    )  # (3, 3, B)
    rotmat_az = jnp.transpose(rotmat_az, (2, 0, 1))  # (B, 3, 3)
    rotmat_el = jnp.transpose(rotmat_el, (2, 0, 1))  # (B, 3, 3)
    return jnp.matmul(rotmat_el, rotmat_az).astype(jnp.float32)


# ----------------------------------------------------------------------------
# Generation-aware budgets and tile selection
# ----------------------------------------------------------------------------

def _generation_budgets():
    """Return (buffered_budget_bytes, vmem_limit_bytes, want_multi_step_grid)."""
    vmem_cap = None
    try:
        vmem_cap = int(pltpu.get_tpu_info().vmem_capacity_bytes)
    except Exception:
        vmem_cap = None
    if vmem_cap is not None and vmem_cap > 64 * _MIB:
        # v5e / v6e: 128 MiB physical VMEM, single TensorCore.  Raise the scoped
        # limit and spend it on ~4+ MiB nominal blocks.
        return 56 * _MIB, 64 * _MIB, False
    # v7x-like (64 MiB physical VMEM, 2 TensorCores) or unknown: cap the total
    # buffered footprint well under physical VMEM and make sure at least one
    # "parallel" grid axis has >= 2 steps so both cores get work.
    return 40 * _MIB, 48 * _MIB, True


def _round_up(x, m):
    return -(-x // m) * m


# Real (padded) VMEM bytes per (batch row x lane) of a (Bt, 3, Nt) f32 block:
# 2 operands (in + out) * 2 buffers (default pipelining) * 8 padded sublanes
# (the 3-row slab pads to 8) * 4 bytes.
_BYTES_PER_BATCH_LANE_3D = 2 * 2 * 8 * 4  # = 128


def _pick_tiles_3d(batch, n, buffered_budget, want_split):
    """Pick (Bt, Nt) for the (B, 3, N) path with real VMEM accounting."""
    per_lane = _BYTES_PER_BATCH_LANE_3D
    # Lane tile: a multiple of 128 targeting the 2K-8K range, or full extent
    # for small ragged N.  Edge blocks (pl.cdiv grid) handle N % Nt != 0.
    if n % 128 == 0:
        nt = min(n, 8192)
    elif n <= 8192 and per_lane * n <= buffered_budget:
        nt = n                                    # small ragged N: full-extent lane block
    else:
        nt = min(_round_up(n, 128), 8192)         # ragged & large: masked edge block
    if nt % 128 == 0 and per_lane * nt > buffered_budget:
        nt = max(128, (buffered_budget // per_lane) // 128 * 128)
    # Batch tile: as many rows as fit the (padded, double-buffered) budget.
    bt = max(1, min(batch, buffered_budget // (per_lane * nt)))
    # If the batch axis is exhausted, spend leftover budget on wider lane tiles.
    if bt == batch and n > nt:
        nt_budget = (buffered_budget // (per_lane * batch)) // 128 * 128
        nt_full = n if n % 128 == 0 else (n // 128) * 128
        nt = max(nt, min(nt_full, nt_budget))
    # v7x megacore: guarantee >= 2 grid steps along a parallel axis if possible.
    if want_split and pl.cdiv(batch, bt) * pl.cdiv(n, nt) < 2:
        if n > 128:
            nt = max(128, (nt // 256) * 128)
        elif batch > 1:
            bt = max(1, batch // 2)
    return bt, nt


def _pick_bt_2d(batch, n, buffered_budget, want_split):
    """Batch tile (multiple of 8) for the dense (B, 3N) path, or None to skip it."""
    per_8rows = 2 * 2 * 8 * (3 * n) * 4   # in+out, double-buffered, 8 rows, f32 (no padding)
    if per_8rows > buffered_budget:
        return None                        # whole 3N row doesn't fit -> 3-D path tiles N
    bt = 8 * max(1, min(batch // 8, buffered_budget // per_8rows))
    if want_split:
        if batch // 8 < 2:
            return None                    # can't give v7x two steps here; 3-D path can split N
        if pl.cdiv(batch, bt) < 2:
            bt = max(8, (batch // 2) // 8 * 8)
    return bt


# ----------------------------------------------------------------------------
# Public wrapper
# ----------------------------------------------------------------------------

def world2cam(xyz, az, el, d_min, d_max, batch_size, n_pts=1024, *,
              channel_major_output=False, vmem_buffer_budget_bytes=None):
    """Pallas equivalent of World2Cam.forward.

    xyz: (batch_size, 3, N) f32 world points; az/el: (batch_size,) angles.
    Returns (batch_size, N, 3) f32 (module semantics).  Preferred fast path:
    pass channel_major_output=True to get the kernel's native (B, 3, N) result
    and skip the final permute (one fewer full HBM pass).
    vmem_buffer_budget_bytes overrides the per-generation VMEM budget (testing).
    """
    del d_max, n_pts  # the reference forward only uses d_min; N comes from xyz

    xyz = jnp.asarray(xyz, jnp.float32)
    B, C, N = xyz.shape
    assert C == 3 and B == int(batch_size)

    rotmat = _build_rotmat(jnp.asarray(az, jnp.float32),
                           jnp.asarray(el, jnp.float32))              # (B, 3, 3)
    neg_t = jnp.zeros((B, 3, 1), jnp.float32).at[:, 2, 0].set(
        -jnp.asarray(d_min, jnp.float32))                             # (B, 3, 1) = -t

    buffered_budget, vmem_limit, want_split = _generation_budgets()
    if vmem_buffer_budget_bytes is not None:
        buffered_budget = int(vmem_buffer_budget_bytes)

    bt2 = None
    if (N % 128 == 0) and (B % 8 == 0):
        bt2 = _pick_bt_2d(B, N, buffered_budget, want_split)

    if bt2 is not None:
        # ---- fully dense (B, 3N) path: no sublane padding, unmasked stores ----
        aff2d = jnp.concatenate(
            [rotmat.reshape(B, 9), neg_t.reshape(B, 3)], axis=1)      # (B, 12)
        xyz2d = xyz.reshape(B, 3 * N)                                 # free view of contiguous (B,3,N)
        out2d = pl.pallas_call(
            functools.partial(_world2cam_kernel_2d, n=N),
            out_shape=jax.ShapeDtypeStruct((B, 3 * N), jnp.float32),
            grid=(pl.cdiv(B, bt2),),
            in_specs=[
                pl.BlockSpec((bt2, 12), lambda bi: (bi, 0)),
                pl.BlockSpec((bt2, 3 * N), lambda bi: (bi, 0)),
            ],
            out_specs=pl.BlockSpec((bt2, 3 * N), lambda bi: (bi, 0)),
            compiler_params=pltpu.CompilerParams(
                dimension_semantics=("parallel",),
                vmem_limit_bytes=vmem_limit,
            ),
        )(aff2d, xyz2d)
        out_cm = out2d.reshape(B, 3, N)
    else:
        # ---- general channel-major (B, 3, N) path (any B, any N) ----
        aff = jnp.concatenate([rotmat, neg_t], axis=2)                # (B, 3, 4) = [R | -t]
        Bt, Nt = _pick_tiles_3d(B, N, buffered_budget, want_split)
        grid = (pl.cdiv(B, Bt), pl.cdiv(N, Nt))
        out_cm = pl.pallas_call(
            _world2cam_kernel_3d,
            out_shape=jax.ShapeDtypeStruct((B, 3, N), jnp.float32),
            grid=grid,
            in_specs=[
                # Tiny per-batch coefficients; block index constant along the
                # point-tile axis -> stays resident, no re-fetch per N tile.
                pl.BlockSpec((Bt, 3, 4), lambda bi, ni: (bi, 0, 0)),
                pl.BlockSpec((Bt, 3, Nt), lambda bi, ni: (bi, 0, ni)),
            ],
            out_specs=pl.BlockSpec((Bt, 3, Nt), lambda bi, ni: (bi, 0, ni)),
            compiler_params=pltpu.CompilerParams(
                dimension_semantics=("parallel", "parallel"),
                vmem_limit_bytes=vmem_limit,
            ),
        )(aff, xyz)

    if channel_major_output:
        return out_cm                     # (B, 3, N): preferred, no extra HBM pass
    # Module semantics: torch.permute(xyz_out, [0, 2, 1]) -> (B, N, 3).  This is
    # a second full HBM pass; prefer channel_major_output=True when the consumer
    # can take channel-major data.
    # TODO(synk): fuse this relayout into the consumer op so the default path
    # also avoids the extra HBM read+write.
    return jnp.transpose(out_cm, (0, 2, 1))


# ----------------------------------------------------------------------------
# Reference + self-test
# ----------------------------------------------------------------------------

def _reference(xyz, az, el, d_min):
    rotmat = _build_rotmat(az, el)
    xyz_out = jnp.matmul(rotmat, xyz)                                 # (B, 3, N)
    t = jnp.zeros((3, 1), jnp.float32).at[2, 0].set(d_min)
    xyz_out = xyz_out - t[None, :, :]
    return jnp.transpose(xyz_out, (0, 2, 1))                          # (B, N, 3)


def _check(name, xyz, az, el, d_min, d_max, **kw):
    B = xyz.shape[0]
    out = jax.block_until_ready(world2cam(xyz, az, el, d_min, d_max, B, **kw))
    ref = jax.block_until_ready(_reference(xyz, az, el, d_min))
    assert out.shape == ref.shape, (name, out.shape, ref.shape)
    assert jnp.allclose(out, ref, atol=1e-5, rtol=1e-5), f"mismatch ({name})"


if __name__ == "__main__":
    d_min, d_max = 2.0, 4.0
    key = jax.random.PRNGKey(0)

    def make(k, B, N):
        k1, k2, k3 = jax.random.split(k, 3)
        xyz = jax.random.normal(k1, (B, 3, N), dtype=jnp.float32)
        az = jax.random.uniform(k2, (B,), jnp.float32, 0.0, 2.0 * jnp.pi)
        el = jax.random.uniform(k3, (B,), jnp.float32, -0.5, 0.5)
        return xyz, az, el

    ks = jax.random.split(key, 5)

    # 1) Small batch not divisible by 8 -> general 3-D path (default budgets).
    xyz1, az1, el1 = make(ks[0], 2, 256)
    _check("3d-small", xyz1, az1, el1, d_min, d_max)
    # Channel-major fast path (preferred mode: no final permute / extra HBM pass).
    out_cm = jax.block_until_ready(
        world2cam(xyz1, az1, el1, d_min, d_max, 2, channel_major_output=True))
    ref_cm = jnp.transpose(_reference(xyz1, az1, el1, d_min), (0, 2, 1))
    assert out_cm.shape == (2, 3, 256)
    assert jnp.allclose(out_cm, ref_cm, atol=1e-5, rtol=1e-5), "mismatch (channel-major)"

    # 2) B % 8 == 0, N % 128 == 0 -> dense 2-D (B, 3N) path on single-core gens
    #    (falls back to the 3-D path with a split point axis on v7x-like chips).
    xyz2, az2, el2 = make(ks[1], 8, 512)
    _check("2d-dense", xyz2, az2, el2, d_min, d_max)

    # 3) Ragged N (not a multiple of 128) -> full-extent lane block or masked
    #    edge blocks depending on generation.
    xyz3, az3, el3 = make(ks[2], 3, 200)
    _check("ragged-N", xyz3, az3, el3, d_min, d_max)

    # 4) Tiny forced budget -> multi-step grid on BOTH axes of the 3-D path
    #    (exercises tiling, index maps and per-block VMEM accounting).
    xyz4, az4, el4 = make(ks[3], 4, 1024)
    _check("3d-tiled", xyz4, az4, el4, d_min, d_max,
           vmem_buffer_budget_bytes=32 * 1024)

    # 5) Batch edge block (Bt=2 over B=3) -> masked partial batch tile.
    xyz5, az5, el5 = make(ks[4], 3, 256)
    _check("batch-edge", xyz5, az5, el5, d_min, d_max,
           vmem_buffer_budget_bytes=64 * 1024)

    print("KERNEL_OK")
</pallas_src>

<mosaic_0001>
module attributes {stable_mosaic.version = 11 : i64} {
  func.func @_world2cam_kernel_3d(%arg0: i32, %arg1: i32, %arg2: memref<2x3x4xf32, #tpu.memory_space<vmem>>, %arg3: memref<2x3x128xf32, #tpu.memory_space<vmem>>, %arg4: memref<2x3x128xf32, #tpu.memory_space<vmem>>) attributes {dimension_semantics = [#tpu.dimension_semantics<parallel>, #tpu.dimension_semantics<parallel>], iteration_bounds = array<i64: 1, 2>, scalar_prefetch = 0 : i64, scratch_operands = 0 : i64, tpu.core_type = #tpu.core_type<tc>, window_params = [{transform_indices = @transform_0, window_bounds = array<i64: 2, 3, 4>}, {transform_indices = @transform_1, window_bounds = array<i64: 2, 3, 128>}, {transform_indices = @transform_2, window_bounds = array<i64: 2, 3, 128>}]} {
    %c0 = arith.constant 0 : index
    %c0_0 = arith.constant 0 : index
    %c0_1 = arith.constant 0 : index
    %0 = vector.load %arg3[%c0, %c0_0, %c0_1] : memref<2x3x128xf32, #tpu.memory_space<vmem>>, vector<2x1x128xf32>
    %c0_2 = arith.constant 0 : index
    %c1 = arith.constant 1 : index
    %c0_3 = arith.constant 0 : index
    %1 = vector.load %arg3[%c0_2, %c1, %c0_3] : memref<2x3x128xf32, #tpu.memory_space<vmem>>, vector<2x1x128xf32>
    %c0_4 = arith.constant 0 : index
    %c2 = arith.constant 2 : index
    %c0_5 = arith.constant 0 : index
    %2 = vector.load %arg3[%c0_4, %c2, %c0_5] : memref<2x3x128xf32, #tpu.memory_space<vmem>>, vector<2x1x128xf32>
    %c0_6 = arith.constant 0 : index
    %c0_7 = arith.constant 0 : index
    %c0_8 = arith.constant 0 : index
    %3 = vector.load %arg2[%c0_6, %c0_7, %c0_8] : memref<2x3x4xf32, #tpu.memory_space<vmem>>, vector<2x3x1xf32>
    %c0_9 = arith.constant 0 : index
    %c0_10 = arith.constant 0 : index
    %c1_11 = arith.constant 1 : index
    %4 = vector.load %arg2[%c0_9, %c0_10, %c1_11] : memref<2x3x4xf32, #tpu.memory_space<vmem>>, vector<2x3x1xf32>
    %c0_12 = arith.constant 0 : index
    %c0_13 = arith.constant 0 : index
    %c2_14 = arith.constant 2 : index
    %5 = vector.load %arg2[%c0_12, %c0_13, %c2_14] : memref<2x3x4xf32, #tpu.memory_space<vmem>>, vector<2x3x1xf32>
    %c0_15 = arith.constant 0 : index
    %c0_16 = arith.constant 0 : index
    %c3 = arith.constant 3 : index
    %6 = vector.load %arg2[%c0_15, %c0_16, %c3] : memref<2x3x4xf32, #tpu.memory_space<vmem>>, vector<2x3x1xf32>
    %7 = vector.broadcast %0 : vector<2x1x128xf32> to vector<2x3x128xf32>
    %8 = vector.broadcast %3 : vector<2x3x1xf32> to vector<2x3x128xf32>
    %9 = arith.mulf %7, %8 : vector<2x3x128xf32>
    %10 = vector.broadcast %1 : vector<2x1x128xf32> to vector<2x3x128xf32>
    %11 = vector.broadcast %4 : vector<2x3x1xf32> to vector<2x3x128xf32>
    %12 = arith.mulf %10, %11 : vector<2x3x128xf32>
    %13 = arith.addf %9, %12 : vector<2x3x128xf32>
    %14 = vector.broadcast %2 : vector<2x1x128xf32> to vector<2x3x128xf32>
    %15 = vector.broadcast %5 : vector<2x3x1xf32> to vector<2x3x128xf32>
    %16 = arith.mulf %14, %15 : vector<2x3x128xf32>
    %17 = arith.addf %13, %16 : vector<2x3x128xf32>
    %18 = vector.broadcast %6 : vector<2x3x1xf32> to vector<2x3x128xf32>
    %19 = arith.addf %17, %18 : vector<2x3x128xf32>
    %c0_17 = arith.constant 0 : index
    %c0_18 = arith.constant 0 : index
    %c0_19 = arith.constant 0 : index
    %20 = vector.load %arg4[%c0_17, %c0_18, %c0_19] : memref<2x3x128xf32, #tpu.memory_space<vmem>>, vector<2x3x128xf32>
    tpu.vector_store %arg4[%c0_17, %c0_18, %c0_19], %19 {strides = array<i32>} : memref<2x3x128xf32, #tpu.memory_space<vmem>>, vector<2x3x128xf32>,
    return
  }
  func.func @transform_0(%arg0: i32, %arg1: i32) -> (i32, i32, i32) {
    %c0_i32 = arith.constant 0 : i32
    %c0_i32_0 = arith.constant 0 : i32
    %c0_i32_1 = arith.constant 0 : i32
    return %arg0, %c0_i32, %c0_i32_0 : i32, i32, i32
  }
  func.func @transform_1(%arg0: i32, %arg1: i32) -> (i32, i32, i32) {
    %c0_i32 = arith.constant 0 : i32
    %c0_i32_0 = arith.constant 0 : i32
    return %arg0, %c0_i32, %arg1 : i32, i32, i32
  }
  func.func @transform_2(%arg0: i32, %arg1: i32) -> (i32, i32, i32) {
    %c0_i32 = arith.constant 0 : i32
    %c0_i32_0 = arith.constant 0 : i32
    return %arg0, %c0_i32, %arg1 : i32, i32, i32
  }
}

</mosaic_0001>

<llo_original>
// kernel: tpu_custom_call.1
$region0: #{tpu_custom_call.1}
  #allocation0 [shape = 'u32[]', space=smem, size = 0x4, offset = 0x4, fixed_abs, tag = 'smem constant byte address 0x4 - core index']
  #allocation1 [shape = 'u32[144,128]{1,0:T(1,128)}', space=vmem, size = 0x12000, scoped, tag = 'internal scratch']
  %s0 = inlined_call_operand.vmem [shape: f32[2,3,4], index: 0, kind: input, shape index: {}]
  %s1 = inlined_call_operand.vmem [shape: f32[2,3,256], index: 1, kind: input, shape index: {}]
  %s2 = inlined_call_operand.vmem [shape: f32[2,3,256], index: 2, kind: output, shape index: {}]
  %s3 = sld [smem:[#allocation0]]
  $region119: #{tpu_custom_call.1} parent=0
    _
  %s5 = ssub.s32 1, %s3
  %s6 = scalar_select 0, %s5, %s3
  $region1: #{tpu_custom_call.1} parent=0
    #allocation2 [shape = 'u8[8192]{0}', space=vmem, size = 0x2000, scoped, tag = 'input window, operand 1']
    #allocation3 [shape = 'u8[8192]{0}', space=vmem, size = 0x2000, scoped, tag = 'output window, operand 0']
    loop: start=0, step=1, limit=4
    $region2: #{tpu_custom_call.1} parent=1 // loop_pre_header
      _
    $region3: #{tpu_custom_call.1} parent=1 // loop_header
      %s8 = sphi 0, %s12
      %p9 = scmp.ge.s32.totalorder %s8, 4
      %s15 = sphi 0, %s27
      %s16 = sphi 0, %s23
      %s17 = sphi 0, %s15
      %s18 = sphi 0, %s16
      %s19 = sphi 0, %s17
      %s20 = sphi 0, %s18
      %s30 = sphi 0, %s32
      %s33 = sphi 0, %s30
      %s34 = sphi 0, %s33
      %s50 = sphi 0, %s34
      %s58 = sphi 0, %s60
      %s61 = sphi 0, %s58
      %s62 = sphi 0, %s61
      %s78 = sphi 0, %s62
      %s86 = sphi 0, %s88
      %s89 = sphi 0, %s86
      %s90 = sphi 0, %s89
      %s106 = sphi 0, %s90
    $region4: #{tpu_custom_call.1} parent=1 // loop_header_branch
      %11 = sbr.rel (%p9) target = $region8
    $region5: #{tpu_custom_call.1} parent=1 // loop_body
      %s13 = ssub.s32 %s8, 1
      %s14 = ssub.s32 %s8, 2
      %s21 = sadd.s32 1, %s16
      %p22 = scmp.ge.s32.totalorder %s21, 2
      %s23 = scalar_select %p22, 0, %s21
      %s24 = sadd.s32 1, %s15
      %s25 = scalar_select %p22, %s24, %s15
      %p26 = scmp.ge.s32.totalorder %s25, 1
      %s27 = scalar_select %p26, 0, %s25
      %s28 = ssub.s32 %s15, %s27
      %p29 = scmp.eq.s32.totalorder %s28, 0
      %s31 = sadd.s32 %s30, 1
      %s32 = scalar_select %p29, %s30, %s31
      %p35 = pneg %p29
      %p36 = scmp.eq.s32.totalorder %s8, 1
      %p37 = por %p35, %p36
      %p38 = scmp.ne.s32.totalorder %s30, %s33
      %p39 = scmp.eq.s32.totalorder %s8, 0
      %p40 = por %p38, %p39
      %p41 = scmp.ne.s32.totalorder %s30, %s33
      %p42 = scmp.eq.s32.totalorder %s13, 1
      %p43 = por %p41, %p42
      %p44 = scmp.ne.s32.totalorder %s33, %s34
      %p45 = scmp.eq.s32.totalorder %s13, 0
      %p46 = por %p44, %p45
      %p47 = scmp.ne.s32.totalorder %s33, %s34
      %p48 = scmp.eq.s32.totalorder %s14, 1
      %p49 = por %p47, %p48
      %p51 = scmp.ne.s32.totalorder %s34, %s50
      %p52 = scmp.eq.s32.totalorder %s14, 0
      %p53 = por %p51, %p52
      %s54 = ssub.s32 %s15, %s27
      %s55 = ssub.s32 %s16, %s23
      %s56 = sor.u32 %s54, %s55
      %p57 = scmp.eq.s32.totalorder %s56, 0
      %s59 = sadd.s32 %s58, 1
      %s60 = scalar_select %p57, %s58, %s59
      %p63 = pneg %p57
      %p64 = scmp.eq.s32.totalorder %s8, 1
      %p65 = por %p63, %p64
      %p66 = scmp.ne.s32.totalorder %s58, %s61
      %p67 = scmp.eq.s32.totalorder %s8, 0
      %p68 = por %p66, %p67
      %p69 = scmp.ne.s32.totalorder %s58, %s61
      %p70 = scmp.eq.s32.totalorder %s13, 1
      %p71 = por %p69, %p70
      %p72 = scmp.ne.s32.totalorder %s61, %s62
      %p73 = scmp.eq.s32.totalorder %s13, 0
      %p74 = por %p72, %p73
      %p75 = scmp.ne.s32.totalorder %s61, %s62
      %p76 = scmp.eq.s32.totalorder %s14, 1
      %p77 = por %p75, %p76
      %p79 = scmp.ne.s32.totalorder %s62, %s78
      %p80 = scmp.eq.s32.totalorder %s14, 0
      %p81 = por %p79, %p80
      %s82 = ssub.s32 %s15, %s27
      %s83 = ssub.s32 %s16, %s23
      %s84 = sor.u32 %s82, %s83
      %p85 = scmp.eq.s32.totalorder %s84, 0
      %s87 = sadd.s32 %s86, 1
      %s88 = scalar_select %p85, %s86, %s87
      %p91 = pneg %p85
      %p92 = scmp.eq.s32.totalorder %s8, 1
      %p93 = por %p91, %p92
      %p94 = scmp.ne.s32.totalorder %s86, %s89
      %p95 = scmp.eq.s32.totalorder %s8, 0
      %p96 = por %p94, %p95
      %p97 = scmp.ne.s32.totalorder %s86, %s89
      %p98 = scmp.eq.s32.totalorder %s13, 1
      %p99 = por %p97, %p98
      %p100 = scmp.ne.s32.totalorder %s89, %s90
      %p101 = scmp.eq.s32.totalorder %s13, 0
      %p102 = por %p100, %p101
      %p103 = scmp.ne.s32.totalorder %s89, %s90
      %p104 = scmp.eq.s32.totalorder %s14, 1
      %p105 = por %p103, %p104
      %p107 = scmp.ne.s32.totalorder %s90, %s106
      %p108 = scmp.eq.s32.totalorder %s14, 0
      %p109 = por %p107, %p108
      %p110 = scmp.le.s32.totalorder 1, %s8
      %p111 = scmp.lt.s32.totalorder %s8, 3
      %p112 = pnand %p110, %p111
      %p113 = pneg %p112
      // Predicated region
      $region9: #{tpu_custom_call.1} parent=5 // pred_check
        _
      $region10: #{tpu_custom_call.1} parent=5 // pred_check_branch
        %115 = sbr.rel (%p112) target = $region12
      $region11: #{tpu_custom_call.1} parent=5 // pred_region
        %s116 = ssub.s32 %s8, 1
        // Predicated region
        $region13: #{tpu_custom_call.1} parent=11 // pred_check
          %p117 = pneg %p46
        $region14: #{tpu_custom_call.1} parent=11 // pred_check_branch
          %119 = sbr.rel (%p117) target = $region16
        $region15: #{tpu_custom_call.1} parent=11 // pred_region
          %s120 = smul.u32 2, %s17
          %p121 = scmp.lt.s32.totalorder %s120, 1
          %s122 = scalar_select %p121, %s120, 1
          %s123 = smul.addr %s122, 4
          %s124 = scalar_lea.vmem %s0, %s123
          %s125 = smul.u32 2, %s17
        $region16: #{tpu_custom_call.1} parent=11 // pred_fallthru
          _
      $region12: #{tpu_custom_call.1} parent=5 // pred_fallthru
        _
      %p126 = scmp.lt.s32.totalorder %s8, 2
      // Predicated region
      $region17: #{tpu_custom_call.1} parent=5 // pred_check
        %p127 = pneg %p126
      $region18: #{tpu_custom_call.1} parent=5 // pred_check_branch
        %129 = sbr.rel (%p127) target = $region20
      $region19: #{tpu_custom_call.1} parent=5 // pred_region
        // Predicated region
        $region21: #{tpu_custom_call.1} parent=19 // pred_check
          %p130 = pneg %p68
        $region22: #{tpu_custom_call.1} parent=19 // pred_check_branch
          %132 = sbr.rel (%p130) target = $region24
        $region23: #{tpu_custom_call.1} parent=19 // pred_region
          %s133 = sand.u32 %s58, 1
          %s134 = sand.u32 %s58, 1
          %s135 = smul.addr %s134, 8
          %s136 = scalar_lea.vmem [#allocation2], %s135
          %s137 = smul.u32 2, %s15
          %s138 = smul.addr %s137, 2
          %s139 = sadd.s32 %s16, %s138
          %s140 = smul.addr %s139, 4
          %s141 = scalar_lea.vmem %s1, %s140
          // Predicated region
          $region25: #{tpu_custom_call.1} parent=23 // pred_check
            _
          $region26: #{tpu_custom_call.1} parent=23 // pred_check_branch
            %143 = sbr.rel (0) target = $region28
          $region27: #{tpu_custom_call.1} parent=23 // pred_region
            // Predicated region
            $region29: #{tpu_custom_call.1} parent=27 // pred_check
              _
            $region30: #{tpu_custom_call.1} parent=27 // pred_check_branch
              %145 = sbr.rel target = $region32
            $region31: #{tpu_custom_call.1} parent=27 // pred_region
              // Predicated region
              $region44: #{tpu_custom_call.1} parent=31 // pred_check
                _
              $region45: #{tpu_custom_call.1} parent=31 // pred_check_branch
                %162 = sbr.rel (0) target = $region47
              $region46: #{tpu_custom_call.1} parent=31 // pred_region
                loop: start=0, step=1, limit=1
                $region48: #{tpu_custom_call.1} parent=46 // loop_pre_header
                  _
                $region49: #{tpu_custom_call.1} parent=46 // loop_header
                  %s164 = sphi 0, %s168
                  %p165 = scmp.ge.s32.totalorder %s164, 1
                  %s169 = sphi %s141, %s141
                  %s170 = sphi %s136, %s136
                $region50: #{tpu_custom_call.1} parent=46 // loop_header_branch
                  %167 = sbr.rel (%p165) target = $region54
                $region51: #{tpu_custom_call.1} parent=46 // loop_body
                  _
                $region52: #{tpu_custom_call.1} parent=46 // loop_footer
                  %s168 = sadd.s32 1, %s164
                $region53: #{tpu_custom_call.1} parent=46 // loop_footer_branch
                  %163 = sbr.rel target = $region49
                $region54: #{tpu_custom_call.1} parent=46 // loop_exit
                  _
                loop: start=0, step=1, limit=1
                $region55: #{tpu_custom_call.1} parent=46 // loop_pre_header
                  _
                $region56: #{tpu_custom_call.1} parent=46 // loop_header
                  %s173 = sphi 0, %s177
                  %p174 = scmp.ge.s32.totalorder %s173, 1
                  %s178 = sphi %s141, %s141
                  %s179 = sphi %s136, %s136
                $region57: #{tpu_custom_call.1} parent=46 // loop_header_branch
                  %176 = sbr.rel (%p174) target = $region61
                $region58: #{tpu_custom_call.1} parent=46 // loop_body
                  %v180 = vld [vmem:[%s178] sm:$0xf]
                  %181 = vst [vmem:[%s179] sm:$0xf] %v180
                  %v182 = vld [vmem:[%s178 + $0x8] sm:$0xf]
                  %183 = vst [vmem:[%s179 + $0x4] sm:$0xf] %v182
                $region59: #{tpu_custom_call.1} parent=46 // loop_footer
                  %s177 = sadd.s32 1, %s173
                $region60: #{tpu_custom_call.1} parent=46 // loop_footer_branch
                  %172 = sbr.rel target = $region56
                $region61: #{tpu_custom_call.1} parent=46 // loop_exit
                  _
              $region47: #{tpu_custom_call.1} parent=31 // pred_fallthru
                _
            $region32: #{tpu_custom_call.1} parent=27 // pred_fallthru
              _
            // Predicated region
            $region33: #{tpu_custom_call.1} parent=27 // pred_check
              _
            $region34: #{tpu_custom_call.1} parent=27 // pred_check_branch
              %147 = sbr.rel (0) target = $region36
            $region35: #{tpu_custom_call.1} parent=27 // pred_region
              loop: start=0, step=1, limit=1
              $region37: #{tpu_custom_call.1} parent=35 // loop_pre_header
                _
              $region38: #{tpu_custom_call.1} parent=35 // loop_header
                %s150 = sphi 0, %s154
                %p151 = scmp.ge.s32.totalorder %s150, 1
                %s155 = sphi %s141, %s141
                %s156 = sphi %s136, %s136
              $region39: #{tpu_custom_call.1} parent=35 // loop_header_branch
                %153 = sbr.rel (%p151) target = $region43
              $region40: #{tpu_custom_call.1} parent=35 // loop_body
                %v157 = vld [vmem:[%s155] sm:$0xf]
                %158 = vst [vmem:[%s156] sm:$0xf] %v157
                %v159 = vld [vmem:[%s155 + $0x8] sm:$0xf]
                %160 = vst [vmem:[%s156 + $0x4] sm:$0xf] %v159
              $region41: #{tpu_custom_call.1} parent=35 // loop_footer
                %s154 = sadd.s32 1, %s150
              $region42: #{tpu_custom_call.1} parent=35 // loop_footer_branch
                %149 = sbr.rel target = $region38
              $region43: #{tpu_custom_call.1} parent=35 // loop_exit
                _
            $region36: #{tpu_custom_call.1} parent=27 // pred_fallthru
              _
          $region28: #{tpu_custom_call.1} parent=23 // pred_fallthru
            _
          %184 = vnop
        $region24: #{tpu_custom_call.1} parent=19 // pred_fallthru
          _
      $region20: #{tpu_custom_call.1} parent=5 // pred_fallthru
        _
      %p185 = scmp.le.s32.totalorder 1, %s8
      %p186 = scmp.lt.s32.totalorder %s8, 3
      %p187 = pnand %p185, %p186
      %p188 = pneg %p187
      // Predicated region
      $region62: #{tpu_custom_call.1} parent=5 // pred_check
        _
      $region63: #{tpu_custom_call.1} parent=5 // pred_check_branch
        %190 = sbr.rel (%p187) target = $region65
      $region64: #{tpu_custom_call.1} parent=5 // pred_region
        %s191 = ssub.s32 %s8, 1
        %s192 = sand.u32 %s61, 1
        %s193 = sand.u32 %s61, 1
        %s194 = smul.addr %s193, 8
        %s195 = scalar_lea.vmem [#allocation2], %s194
        // Predicated region
        $region66: #{tpu_custom_call.1} parent=64 // pred_check
          %p196 = pneg %p74
        $region67: #{tpu_custom_call.1} parent=64 // pred_check_branch
          %198 = sbr.rel (%p196) target = $region69
        $region68: #{tpu_custom_call.1} parent=64 // pred_region
          _
        $region69: #{tpu_custom_call.1} parent=64 // pred_fallthru
          _
        %s199 = smul.u32 2, %s17
        %p200 = scmp.lt.s32.totalorder %s199, 1
        %s201 = scalar_select %p200, %s199, 1
        %s202 = smul.addr %s201, 4
        %s203 = scalar_lea.vmem %s0, %s202
        %p204 = pneg %p46
        %p205 = pneg %p43
        %s206 = sand.u32 %s61, 1
        %s207 = sand.u32 %s61, 1
        %s208 = smul.addr %s207, 8
        %s209 = scalar_lea.vmem [#allocation2], %s208
        %p210 = pneg %p74
        %p211 = pneg %p71
        %p212 = pneg %p102
        %p213 = pneg %p99
        %s214 = sand.u32 %s89, 1
        %s215 = sand.u32 %s89, 1
        %s216 = smul.addr %s215, 8
        %s217 = scalar_lea.vmem [#allocation3], %s216
        %s218 = smul.u32 2, %s17
        %p219 = scmp.lt.s32.totalorder %s218, 1
        %s220 = scalar_select %p219, %s218, 1
        %s221 = smul.addr %s220, 4
        %s222 = scalar_lea.vmem %s0, %s221
        %s223 = smul.u32 2, %s17
        %s224 = smul.u32 2, %s17
        %s225 = smul.u32 2, %s17
        %v226 = vld [vmem:[%s195] sm:$0x1]
        %v227 = vld [vmem:[%s195 + $0x4] sm:$0x1]
        %v228 = vld [vmem:[%s195 + $0x1] sm:$0x1]
        %v229 = vld [vmem:[%s195 + $0x5] sm:$0x1]
        %v230 = vld [vmem:[%s195 + $0x2] sm:$0x1]
        %v231 = vld [vmem:[%s195 + $0x6] sm:$0x1]
        %v232 = vld [vmem:[%s222] sm:$0x7]
        %v233 = vld [vmem:[%s222 + $0x4] sm:$0x7]
        %v234 = vlaneseq
        %v235 = vshrl.u32 %v234, 7
        %v236 = vsub.s32 0, %v235
        %v237 = vrot.slane %v226, %v236
        %v238 = vlaneseq
        %v239 = vshrl.u32 %v238, 7
        %v240 = vsub.s32 0, %v239
        %v241 = vrot.slane %v227, %v240
        %243 = vset.pattern.permute.xlu0 0
        %244 = vperm.xlu0 %243, %v232
        %v245 = vpop.permute.xlu0 %244
        %248 = vset.pattern.permute.xlu0 0
        %249 = vperm.xlu0 %248, %v233
        %v250 = vpop.permute.xlu0 %249
        %v252 = vmul.f32 %v237, %v245
        %v253 = vmul.f32 %v241, %v250
        %v254 = vlaneseq
        %v255 = vshrl.u32 %v254, 7
        %v256 = vsub.s32 0, %v255
        %v257 = vrot.slane %v228, %v256
        %v258 = vlaneseq
        %v259 = vshrl.u32 %v258, 7
        %v260 = vsub.s32 0, %v259
        %v261 = vrot.slane %v229, %v260
        %262 = vset.pattern.permute.xlu0 1
        %263 = vperm.xlu0 %262, %v232
        %v264 = vpop.permute.xlu0 %263
        %266 = vset.pattern.permute.xlu0 1
        %267 = vperm.xlu0 %266, %v233
        %v268 = vpop.permute.xlu0 %267
        %v270 = vmul.f32 %v257, %v264
        %v271 = vmul.f32 %v261, %v268
        %v272 = vadd.f32 %v252, %v270
        %v273 = vadd.f32 %v253, %v271
        %v274 = vlaneseq
        %v275 = vshrl.u32 %v274, 7
        %v276 = vsub.s32 0, %v275
        %v277 = vrot.slane %v230, %v276
        %v278 = vlaneseq
        %v279 = vshrl.u32 %v278, 7
        %v280 = vsub.s32 0, %v279
        %v281 = vrot.slane %v231, %v280
        %282 = vset.pattern.permute.xlu0 2
        %283 = vperm.xlu0 %282, %v232
        %v284 = vpop.permute.xlu0 %283
        %286 = vset.pattern.permute.xlu0 2
        %287 = vperm.xlu0 %286, %v233
        %v288 = vpop.permute.xlu0 %287
        %v290 = vmul.f32 %v277, %v284
        %v291 = vmul.f32 %v281, %v288
        %v292 = vadd.f32 %v272, %v290
        %v293 = vadd.f32 %v273, %v291
        %294 = vset.pattern.permute.xlu0 3
        %295 = vperm.xlu0 %294, %v232
        %v296 = vpop.permute.xlu0 %295
        %298 = vset.pattern.permute.xlu0 3
        %299 = vperm.xlu0 %298, %v233
        %v300 = vpop.permute.xlu0 %299
        %v302 = vadd.f32 %v292, %v296
        %v303 = vadd.f32 %v293, %v300
        %304 = vst [vmem:[%s217] sm:$0x7] %v302
        %305 = vst [vmem:[%s217 + $0x4] sm:$0x7] %v303
        %s306 = sand.u32 %s89, 1
        %s307 = sand.u32 %s89, 1
        %s308 = smul.addr %s307, 8
        %s309 = scalar_lea.vmem [#allocation3], %s308
        // Predicated region
        $region70: #{tpu_custom_call.1} parent=64 // pred_check
          %p310 = pneg %p99
        $region71: #{tpu_custom_call.1} parent=64 // pred_check_branch
          %312 = sbr.rel (%p310) target = $region73
        $region72: #{tpu_custom_call.1} parent=64 // pred_region
          %s313 = smul.u32 2, %s17
          %s314 = smul.addr %s313, 2
          %s315 = sadd.s32 %s18, %s314
          %s316 = smul.addr %s315, 4
          %s317 = scalar_lea.vmem %s2, %s316
          // Predicated region
          $region74: #{tpu_custom_call.1} parent=72 // pred_check
            _
          $region75: #{tpu_custom_call.1} parent=72 // pred_check_branch
            %319 = sbr.rel (0) target = $region77
          $region76: #{tpu_custom_call.1} parent=72 // pred_region
            // Predicated region
            $region78: #{tpu_custom_call.1} parent=76 // pred_check
              _
            $region79: #{tpu_custom_call.1} parent=76 // pred_check_branch
              %321 = sbr.rel target = $region81
            $region80: #{tpu_custom_call.1} parent=76 // pred_region
              // Predicated region
              $region93: #{tpu_custom_call.1} parent=80 // pred_check
                _
              $region94: #{tpu_custom_call.1} parent=80 // pred_check_branch
                %338 = sbr.rel (0) target = $region96
              $region95: #{tpu_custom_call.1} parent=80 // pred_region
                loop: start=0, step=1, limit=1
                $region97: #{tpu_custom_call.1} parent=95 // loop_pre_header
                  _
                $region98: #{tpu_custom_call.1} parent=95 // loop_header
                  %s340 = sphi 0, %s344
                  %p341 = scmp.ge.s32.totalorder %s340, 1
                  %s345 = sphi %s309, %s309
                  %s346 = sphi %s317, %s317
                $region99: #{tpu_custom_call.1} parent=95 // loop_header_branch
                  %343 = sbr.rel (%p341) target = $region103
                $region100: #{tpu_custom_call.1} parent=95 // loop_body
                  _
                $region101: #{tpu_custom_call.1} parent=95 // loop_footer
                  %s344 = sadd.s32 1, %s340
                $region102: #{tpu_custom_call.1} parent=95 // loop_footer_branch
                  %339 = sbr.rel target = $region98
                $region103: #{tpu_custom_call.1} parent=95 // loop_exit
                  _
                loop: start=0, step=1, limit=1
                $region104: #{tpu_custom_call.1} parent=95 // loop_pre_header
                  _
                $region105: #{tpu_custom_call.1} parent=95 // loop_header
                  %s349 = sphi 0, %s353
                  %p350 = scmp.ge.s32.totalorder %s349, 1
                  %s354 = sphi %s309, %s309
                  %s355 = sphi %s317, %s317
                $region106: #{tpu_custom_call.1} parent=95 // loop_header_branch
                  %352 = sbr.rel (%p350) target = $region110
                $region107: #{tpu_custom_call.1} parent=95 // loop_body
                  %v356 = vld [vmem:[%s354] sm:$0xf]
                  %357 = vst [vmem:[%s355] sm:$0xf] %v356
                  %v358 = vld [vmem:[%s354 + $0x4] sm:$0xf]
                  %359 = vst [vmem:[%s355 + $0x8] sm:$0xf] %v358
                $region108: #{tpu_custom_call.1} parent=95 // loop_footer
                  %s353 = sadd.s32 1, %s349
                $region109: #{tpu_custom_call.1} parent=95 // loop_footer_branch
                  %348 = sbr.rel target = $region105
                $region110: #{tpu_custom_call.1} parent=95 // loop_exit
                  _
              $region96: #{tpu_custom_call.1} parent=80 // pred_fallthru
                _
            $region81: #{tpu_custom_call.1} parent=76 // pred_fallthru
              _
            // Predicated region
            $region82: #{tpu_custom_call.1} parent=76 // pred_check
              _
            $region83: #{tpu_custom_call.1} parent=76 // pred_check_branch
              %323 = sbr.rel (0) target = $region85
            $region84: #{tpu_custom_call.1} parent=76 // pred_region
              loop: start=0, step=1, limit=1
              $region86: #{tpu_custom_call.1} parent=84 // loop_pre_header
                _
              $region87: #{tpu_custom_call.1} parent=84 // loop_header
                %s326 = sphi 0, %s330
                %p327 = scmp.ge.s32.totalorder %s326, 1
                %s331 = sphi %s309, %s309
                %s332 = sphi %s317, %s317
              $region88: #{tpu_custom_call.1} parent=84 // loop_header_branch
                %329 = sbr.rel (%p327) target = $region92
              $region89: #{tpu_custom_call.1} parent=84 // loop_body
                %v333 = vld [vmem:[%s331] sm:$0xf]
                %334 = vst [vmem:[%s332] sm:$0xf] %v333
                %v335 = vld [vmem:[%s331 + $0x4] sm:$0xf]
                %336 = vst [vmem:[%s332 + $0x8] sm:$0xf] %v335
              $region90: #{tpu_custom_call.1} parent=84 // loop_footer
                %s330 = sadd.s32 1, %s326
              $region91: #{tpu_custom_call.1} parent=84 // loop_footer_branch
                %325 = sbr.rel target = $region87
              $region92: #{tpu_custom_call.1} parent=84 // loop_exit
                _
            $region85: #{tpu_custom_call.1} parent=76 // pred_fallthru
              _
          $region77: #{tpu_custom_call.1} parent=72 // pred_fallthru
            _
          %360 = vnop
        $region73: #{tpu_custom_call.1} parent=64 // pred_fallthru
          _
      $region65: #{tpu_custom_call.1} parent=5 // pred_fallthru
        _
      %p361 = scmp.le.s32.totalorder 2, %s8
      // Predicated region
      $region111: #{tpu_custom_call.1} parent=5 // pred_check
        %p362 = pneg %p361
      $region112: #{tpu_custom_call.1} parent=5 // pred_check_branch
        %364 = sbr.rel (%p362) target = $region114
      $region113: #{tpu_custom_call.1} parent=5 // pred_region
        %s365 = ssub.s32 %s8, 2
        // Predicated region
        $region115: #{tpu_custom_call.1} parent=113 // pred_check
          %p366 = pneg %p105
        $region116: #{tpu_custom_call.1} parent=113 // pred_check_branch
          %368 = sbr.rel (%p366) target = $region118
        $region117: #{tpu_custom_call.1} parent=113 // pred_region
          %s369 = sand.u32 %s90, 1
          %s370 = sand.u32 %s90, 1
          %s371 = smul.addr %s370, 8
          %s372 = scalar_lea.vmem [#allocation3], %s371
        $region118: #{tpu_custom_call.1} parent=113 // pred_fallthru
          _
      $region114: #{tpu_custom_call.1} parent=5 // pred_fallthru
        _
    $region6: #{tpu_custom_call.1} parent=1 // loop_footer
      %s12 = sadd.s32 1, %s8
    $region7: #{tpu_custom_call.1} parent=1 // loop_footer_branch
      %7 = sbr.rel target = $region3
    $region8: #{tpu_custom_call.1} parent=1 // loop_exit
      _

</llo_original>
